<compile_context>
chip_gen: v7x
topology: tpu7x:2x2x1
jax: 0.10.0
libtpu: 0.0.40
codegen_flags: <defaults>
</compile_context>

<pallas_src>
import math

import jax
import jax.numpy as jnp
from jax import lax
from jax.experimental import pallas as pl
from jax.experimental.pallas import tpu as pltpu

# ---- module hyper-parameters (small, consistent with the PyTorch module) ----
Z_DIM = 32
W_DIM = 32
NUM_LAYERS = 8
LR_MULT = 0.01
NEG_SLOPE = 0.01            # nn.LeakyReLU() default negative_slope
BATCH = 8


def _leaky_relu(x):
    return jnp.where(x >= 0, x, NEG_SLOPE * x)


def mapping_net_kernel(zt_ref, w0_ref, b0_ref, wr_ref, br_ref, out_ref):
    """Forward pass on one batch tile, transposed layout [dim, batch].

    zt_ref : (Z_DIM, TB)                   input latents, transposed
    w0_ref : (W_DIM, Z_DIM)                first layer weight (pre-scaled)
    b0_ref : (W_DIM, 1)                    first layer bias   (pre-scaled)
    wr_ref : (NUM_LAYERS-1, W_DIM, W_DIM)  remaining weights  (pre-scaled)
    br_ref : (NUM_LAYERS-1, W_DIM, 1)      remaining biases   (pre-scaled)
    out_ref: (W_DIM, TB)
    """
    zt = zt_ref[...]

    # pixel norm over the feature axis (axis 0 in this layout); rsqrt -> EUP
    ms = jnp.mean(zt * zt, axis=0, keepdims=True)            # (1, TB)
    h = zt * lax.rsqrt(ms + 1e-8)

    # Layer 0: z_dim -> w_dim.  Weight is [out, in], activation is [in, TB]
    # so W @ h needs no transpose and feeds the MXU directly.
    h = _leaky_relu(
        jnp.dot(w0_ref[...], h, preferred_element_type=jnp.float32) + b0_ref[...]
    )

    # Layers 1 .. NUM_LAYERS-1 (static unrolled, weights already scaled)
    for i in range(NUM_LAYERS - 1):
        h = _leaky_relu(
            jnp.dot(wr_ref[i], h, preferred_element_type=jnp.float32) + br_ref[i]
        )

    out_ref[...] = h.astype(out_ref.dtype)


def _pick_batch_tile(B):
    """Largest convenient lane tile that divides B and satisfies (.,128) rules."""
    for tb in (512, 256, 128):
        if B % tb == 0:
            return tb
    return B  # full-dim block (always legal)


def mapping_net(z, w0, b0, wr, br):
    """z: (B, Z_DIM).  Raw PyTorch-layout parameters:
       w0 (W_DIM, Z_DIM), b0 (W_DIM,), wr (L-1, W_DIM, W_DIM), br (L-1, W_DIM).
    """
    B = z.shape[0]
    TB = _pick_batch_tile(B)

    # ---- one-time parameter prep (constants per call): fold equalized-LR scales
    #      and reshape biases for the [dim, batch] broadcast.  Layout plumbing only.
    w0_s = w0 * (LR_MULT / math.sqrt(Z_DIM))
    b0_s = (b0 * LR_MULT).reshape(W_DIM, 1)
    wr_s = wr * (LR_MULT / math.sqrt(W_DIM))
    br_s = (br * LR_MULT).reshape(NUM_LAYERS - 1, W_DIM, 1)
    zt = z.T                                   # (Z_DIM, B): batch on lanes

    out_t = pl.pallas_call(
        mapping_net_kernel,
        out_shape=jax.ShapeDtypeStruct((W_DIM, B), jnp.float32),
        grid=(B // TB,),
        in_specs=[
            pl.BlockSpec((Z_DIM, TB), lambda i: (0, i)),
            # constant index_maps -> weights DMA'd once, VMEM-resident across grid
            pl.BlockSpec((W_DIM, Z_DIM), lambda i: (0, 0)),
            pl.BlockSpec((W_DIM, 1), lambda i: (0, 0)),
            pl.BlockSpec((NUM_LAYERS - 1, W_DIM, W_DIM), lambda i: (0, 0, 0)),
            pl.BlockSpec((NUM_LAYERS - 1, W_DIM, 1), lambda i: (0, 0, 0)),
        ],
        out_specs=pl.BlockSpec((W_DIM, TB), lambda i: (0, i)),
        compiler_params=pltpu.CompilerParams(
            dimension_semantics=("parallel",),
        ),
    )(zt, w0_s, b0_s, wr_s, br_s)

    return out_t.T                              # back to (B, W_DIM)


def mapping_net_reference(z, w0, b0, wr, br):
    """Pure-JAX reference mirroring the PyTorch forward exactly."""
    h = z / jnp.sqrt(jnp.mean(z * z, axis=1, keepdims=True) + 1e-8)
    h = _leaky_relu(h @ (w0 * (LR_MULT / math.sqrt(Z_DIM))).T + b0 * LR_MULT)
    for i in range(NUM_LAYERS - 1):
        wi = wr[i] * (LR_MULT / math.sqrt(W_DIM))
        bi = br[i] * LR_MULT
        h = _leaky_relu(h @ wi.T + bi)
    return h


if __name__ == "__main__":
    key = jax.random.PRNGKey(0)
    keys = jax.random.split(key, NUM_LAYERS + 1)

    # Deterministic synthetic parameters (PyTorch init: randn / lr_multiplier, bias=0).
    z = jax.random.normal(keys[0], (BATCH, Z_DIM), dtype=jnp.float32)
    w0 = jax.random.normal(keys[1], (W_DIM, Z_DIM), dtype=jnp.float32) / LR_MULT
    b0 = jnp.zeros((W_DIM,), dtype=jnp.float32)
    wr = jnp.stack(
        [jax.random.normal(keys[2 + i], (W_DIM, W_DIM), dtype=jnp.float32) / LR_MULT
         for i in range(NUM_LAYERS - 1)]
    )
    br = jnp.zeros((NUM_LAYERS - 1, W_DIM), dtype=jnp.float32)

    out = mapping_net(z, w0, b0, wr, br)
    out = jax.block_until_ready(out)

    ref = mapping_net_reference(z, w0, b0, wr, br)
    assert out.shape == (BATCH, W_DIM)
    assert jnp.allclose(out, ref, atol=1e-4, rtol=1e-4), "mismatch vs reference"

    print("KERNEL_OK")
</pallas_src>

<mosaic_0001>
module attributes {stable_mosaic.version = 11 : i64} {
  func.func @mapping_net_kernel(%arg0: i32, %arg1: memref<32x8xf32, #tpu.memory_space<vmem>>, %arg2: memref<32x32xf32, #tpu.memory_space<vmem>>, %arg3: memref<32x1xf32, #tpu.memory_space<vmem>>, %arg4: memref<7x32x32xf32, #tpu.memory_space<vmem>>, %arg5: memref<7x32x1xf32, #tpu.memory_space<vmem>>, %arg6: memref<32x8xf32, #tpu.memory_space<vmem>>) attributes {dimension_semantics = [#tpu.dimension_semantics<parallel>], iteration_bounds = array<i64: 1>, scalar_prefetch = 0 : i64, scratch_operands = 0 : i64, tpu.core_type = #tpu.core_type<tc>, window_params = [{transform_indices = @transform_0, window_bounds = array<i64: 32, 8>}, {pipeline_mode = #tpu.pipeline_mode<synchronous>, transform_indices = @transform_1, window_bounds = array<i64: 32, 32>}, {pipeline_mode = #tpu.pipeline_mode<synchronous>, transform_indices = @transform_2, window_bounds = array<i64: 32, 1>}, {pipeline_mode = #tpu.pipeline_mode<synchronous>, transform_indices = @transform_3, window_bounds = array<i64: 7, 32, 32>}, {pipeline_mode = #tpu.pipeline_mode<synchronous>, transform_indices = @transform_4, window_bounds = array<i64: 7, 32, 1>}, {transform_indices = @transform_5, window_bounds = array<i64: 32, 8>}]} {
    %c0 = arith.constant 0 : index
    %c0_0 = arith.constant 0 : index
    %0 = vector.load %arg1[%c0, %c0_0] : memref<32x8xf32, #tpu.memory_space<vmem>>, vector<32x8xf32>
    %1 = arith.mulf %0, %0 : vector<32x8xf32>
    %cst = arith.constant dense<0.000000e+00> : vector<8xf32>
    %2 = vector.multi_reduction <add>, %1, %cst [0] : vector<32x8xf32> to vector<8xf32>
    %3 = vector.shape_cast %2 : vector<8xf32> to vector<1x8xf32>
    %cst_1 = arith.constant 3.200000e+01 : f32
    %4 = vector.broadcast %cst_1 : f32 to vector<1x8xf32>
    %5 = arith.divf %3, %4 : vector<1x8xf32>
    %cst_2 = arith.constant 9.99999993E-9 : f32
    %6 = vector.broadcast %cst_2 : f32 to vector<1x8xf32>
    %7 = arith.addf %5, %6 : vector<1x8xf32>
    %8 = math.rsqrt %7 : vector<1x8xf32>
    %9 = vector.broadcast %8 : vector<1x8xf32> to vector<32x8xf32>
    %10 = arith.mulf %0, %9 : vector<32x8xf32>
    %c0_3 = arith.constant 0 : index
    %c0_4 = arith.constant 0 : index
    %11 = vector.load %arg2[%c0_3, %c0_4] : memref<32x32xf32, #tpu.memory_space<vmem>>, vector<32x32xf32>
    %cst_5 = arith.constant dense<0.000000e+00> : vector<32x8xf32>
    %12 = tpu.matmul %11, %10, %cst_5 {dimension_numbers = #tpu.dot_dimension_numbers<[1], [0], [0], [1], [0, 0, 1, 1], [], []>} : vector<32x32xf32>, vector<32x8xf32>, vector<32x8xf32> -> vector<32x8xf32>
    %c0_6 = arith.constant 0 : index
    %c0_7 = arith.constant 0 : index
    %13 = vector.load %arg3[%c0_6, %c0_7] : memref<32x1xf32, #tpu.memory_space<vmem>>, vector<32x1xf32>
    %14 = vector.broadcast %13 : vector<32x1xf32> to vector<32x8xf32>
    %15 = arith.addf %12, %14 : vector<32x8xf32>
    %cst_8 = arith.constant 0.000000e+00 : f32
    %16 = vector.broadcast %cst_8 : f32 to vector<32x8xf32>
    %17 = arith.cmpf oge, %15, %16 : vector<32x8xf32>
    %cst_9 = arith.constant 0.00999999977 : f32
    %18 = vector.broadcast %cst_9 : f32 to vector<32x8xf32>
    %19 = arith.mulf %18, %15 : vector<32x8xf32>
    %20 = arith.select %17, %15, %19 : vector<32x8xi1>, vector<32x8xf32>
    %c0_10 = arith.constant 0 : index
    %c0_11 = arith.constant 0 : index
    %c0_12 = arith.constant 0 : index
    %21 = vector.load %arg4[%c0_10, %c0_11, %c0_12] : memref<7x32x32xf32, #tpu.memory_space<vmem>>, vector<1x32x32xf32>
    %22 = vector.shape_cast %21 : vector<1x32x32xf32> to vector<32x32xf32>
    %cst_13 = arith.constant dense<0.000000e+00> : vector<32x8xf32>
    %23 = tpu.matmul %22, %20, %cst_13 {dimension_numbers = #tpu.dot_dimension_numbers<[1], [0], [0], [1], [0, 0, 1, 1], [], []>} : vector<32x32xf32>, vector<32x8xf32>, vector<32x8xf32> -> vector<32x8xf32>
    %c0_14 = arith.constant 0 : index
    %c0_15 = arith.constant 0 : index
    %c0_16 = arith.constant 0 : index
    %24 = vector.load %arg5[%c0_14, %c0_15, %c0_16] : memref<7x32x1xf32, #tpu.memory_space<vmem>>, vector<1x32x1xf32>
    %25 = vector.shape_cast %24 : vector<1x32x1xf32> to vector<32x1xf32>
    %26 = vector.broadcast %25 : vector<32x1xf32> to vector<32x8xf32>
    %27 = arith.addf %23, %26 : vector<32x8xf32>
    %cst_17 = arith.constant 0.000000e+00 : f32
    %28 = vector.broadcast %cst_17 : f32 to vector<32x8xf32>
    %29 = arith.cmpf oge, %27, %28 : vector<32x8xf32>
    %cst_18 = arith.constant 0.00999999977 : f32
    %30 = vector.broadcast %cst_18 : f32 to vector<32x8xf32>
    %31 = arith.mulf %30, %27 : vector<32x8xf32>
    %32 = arith.select %29, %27, %31 : vector<32x8xi1>, vector<32x8xf32>
    %c1 = arith.constant 1 : index
    %c0_19 = arith.constant 0 : index
    %c0_20 = arith.constant 0 : index
    %33 = vector.load %arg4[%c1, %c0_19, %c0_20] : memref<7x32x32xf32, #tpu.memory_space<vmem>>, vector<1x32x32xf32>
    %34 = vector.shape_cast %33 : vector<1x32x32xf32> to vector<32x32xf32>
    %cst_21 = arith.constant dense<0.000000e+00> : vector<32x8xf32>
    %35 = tpu.matmul %34, %32, %cst_21 {dimension_numbers = #tpu.dot_dimension_numbers<[1], [0], [0], [1], [0, 0, 1, 1], [], []>} : vector<32x32xf32>, vector<32x8xf32>, vector<32x8xf32> -> vector<32x8xf32>
    %c1_22 = arith.constant 1 : index
    %c0_23 = arith.constant 0 : index
    %c0_24 = arith.constant 0 : index
    %36 = vector.load %arg5[%c1_22, %c0_23, %c0_24] : memref<7x32x1xf32, #tpu.memory_space<vmem>>, vector<1x32x1xf32>
    %37 = vector.shape_cast %36 : vector<1x32x1xf32> to vector<32x1xf32>
    %38 = vector.broadcast %37 : vector<32x1xf32> to vector<32x8xf32>
    %39 = arith.addf %35, %38 : vector<32x8xf32>
    %cst_25 = arith.constant 0.000000e+00 : f32
    %40 = vector.broadcast %cst_25 : f32 to vector<32x8xf32>
    %41 = arith.cmpf oge, %39, %40 : vector<32x8xf32>
    %cst_26 = arith.constant 0.00999999977 : f32
    %42 = vector.broadcast %cst_26 : f32 to vector<32x8xf32>
    %43 = arith.mulf %42, %39 : vector<32x8xf32>
    %44 = arith.select %41, %39, %43 : vector<32x8xi1>, vector<32x8xf32>
    %c2 = arith.constant 2 : index
    %c0_27 = arith.constant 0 : index
    %c0_28 = arith.constant 0 : index
    %45 = vector.load %arg4[%c2, %c0_27, %c0_28] : memref<7x32x32xf32, #tpu.memory_space<vmem>>, vector<1x32x32xf32>
    %46 = vector.shape_cast %45 : vector<1x32x32xf32> to vector<32x32xf32>
    %cst_29 = arith.constant dense<0.000000e+00> : vector<32x8xf32>
    %47 = tpu.matmul %46, %44, %cst_29 {dimension_numbers = #tpu.dot_dimension_numbers<[1], [0], [0], [1], [0, 0, 1, 1], [], []>} : vector<32x32xf32>, vector<32x8xf32>, vector<32x8xf32> -> vector<32x8xf32>
    %c2_30 = arith.constant 2 : index
    %c0_31 = arith.constant 0 : index
    %c0_32 = arith.constant 0 : index
    %48 = vector.load %arg5[%c2_30, %c0_31, %c0_32] : memref<7x32x1xf32, #tpu.memory_space<vmem>>, vector<1x32x1xf32>
    %49 = vector.shape_cast %48 : vector<1x32x1xf32> to vector<32x1xf32>
    %50 = vector.broadcast %49 : vector<32x1xf32> to vector<32x8xf32>
    %51 = arith.addf %47, %50 : vector<32x8xf32>
    %cst_33 = arith.constant 0.000000e+00 : f32
    %52 = vector.broadcast %cst_33 : f32 to vector<32x8xf32>
    %53 = arith.cmpf oge, %51, %52 : vector<32x8xf32>
    %cst_34 = arith.constant 0.00999999977 : f32
    %54 = vector.broadcast %cst_34 : f32 to vector<32x8xf32>
    %55 = arith.mulf %54, %51 : vector<32x8xf32>
    %56 = arith.select %53, %51, %55 : vector<32x8xi1>, vector<32x8xf32>
    %c3 = arith.constant 3 : index
    %c0_35 = arith.constant 0 : index
    %c0_36 = arith.constant 0 : index
    %57 = vector.load %arg4[%c3, %c0_35, %c0_36] : memref<7x32x32xf32, #tpu.memory_space<vmem>>, vector<1x32x32xf32>
    %58 = vector.shape_cast %57 : vector<1x32x32xf32> to vector<32x32xf32>
    %cst_37 = arith.constant dense<0.000000e+00> : vector<32x8xf32>
    %59 = tpu.matmul %58, %56, %cst_37 {dimension_numbers = #tpu.dot_dimension_numbers<[1], [0], [0], [1], [0, 0, 1, 1], [], []>} : vector<32x32xf32>, vector<32x8xf32>, vector<32x8xf32> -> vector<32x8xf32>
    %c3_38 = arith.constant 3 : index
    %c0_39 = arith.constant 0 : index
    %c0_40 = arith.constant 0 : index
    %60 = vector.load %arg5[%c3_38, %c0_39, %c0_40] : memref<7x32x1xf32, #tpu.memory_space<vmem>>, vector<1x32x1xf32>
    %61 = vector.shape_cast %60 : vector<1x32x1xf32> to vector<32x1xf32>
    %62 = vector.broadcast %61 : vector<32x1xf32> to vector<32x8xf32>
    %63 = arith.addf %59, %62 : vector<32x8xf32>
    %cst_41 = arith.constant 0.000000e+00 : f32
    %64 = vector.broadcast %cst_41 : f32 to vector<32x8xf32>
    %65 = arith.cmpf oge, %63, %64 : vector<32x8xf32>
    %cst_42 = arith.constant 0.00999999977 : f32
    %66 = vector.broadcast %cst_42 : f32 to vector<32x8xf32>
    %67 = arith.mulf %66, %63 : vector<32x8xf32>
    %68 = arith.select %65, %63, %67 : vector<32x8xi1>, vector<32x8xf32>
    %c4 = arith.constant 4 : index
    %c0_43 = arith.constant 0 : index
    %c0_44 = arith.constant 0 : index
    %69 = vector.load %arg4[%c4, %c0_43, %c0_44] : memref<7x32x32xf32, #tpu.memory_space<vmem>>, vector<1x32x32xf32>
    %70 = vector.shape_cast %69 : vector<1x32x32xf32> to vector<32x32xf32>
    %cst_45 = arith.constant dense<0.000000e+00> : vector<32x8xf32>
    %71 = tpu.matmul %70, %68, %cst_45 {dimension_numbers = #tpu.dot_dimension_numbers<[1], [0], [0], [1], [0, 0, 1, 1], [], []>} : vector<32x32xf32>, vector<32x8xf32>, vector<32x8xf32> -> vector<32x8xf32>
    %c4_46 = arith.constant 4 : index
    %c0_47 = arith.constant 0 : index
    %c0_48 = arith.constant 0 : index
    %72 = vector.load %arg5[%c4_46, %c0_47, %c0_48] : memref<7x32x1xf32, #tpu.memory_space<vmem>>, vector<1x32x1xf32>
    %73 = vector.shape_cast %72 : vector<1x32x1xf32> to vector<32x1xf32>
    %74 = vector.broadcast %73 : vector<32x1xf32> to vector<32x8xf32>
    %75 = arith.addf %71, %74 : vector<32x8xf32>
    %cst_49 = arith.constant 0.000000e+00 : f32
    %76 = vector.broadcast %cst_49 : f32 to vector<32x8xf32>
    %77 = arith.cmpf oge, %75, %76 : vector<32x8xf32>
    %cst_50 = arith.constant 0.00999999977 : f32
    %78 = vector.broadcast %cst_50 : f32 to vector<32x8xf32>
    %79 = arith.mulf %78, %75 : vector<32x8xf32>
    %80 = arith.select %77, %75, %79 : vector<32x8xi1>, vector<32x8xf32>
    %c5 = arith.constant 5 : index
    %c0_51 = arith.constant 0 : index
    %c0_52 = arith.constant 0 : index
    %81 = vector.load %arg4[%c5, %c0_51, %c0_52] : memref<7x32x32xf32, #tpu.memory_space<vmem>>, vector<1x32x32xf32>
    %82 = vector.shape_cast %81 : vector<1x32x32xf32> to vector<32x32xf32>
    %cst_53 = arith.constant dense<0.000000e+00> : vector<32x8xf32>
    %83 = tpu.matmul %82, %80, %cst_53 {dimension_numbers = #tpu.dot_dimension_numbers<[1], [0], [0], [1], [0, 0, 1, 1], [], []>} : vector<32x32xf32>, vector<32x8xf32>, vector<32x8xf32> -> vector<32x8xf32>
    %c5_54 = arith.constant 5 : index
    %c0_55 = arith.constant 0 : index
    %c0_56 = arith.constant 0 : index
    %84 = vector.load %arg5[%c5_54, %c0_55, %c0_56] : memref<7x32x1xf32, #tpu.memory_space<vmem>>, vector<1x32x1xf32>
    %85 = vector.shape_cast %84 : vector<1x32x1xf32> to vector<32x1xf32>
    %86 = vector.broadcast %85 : vector<32x1xf32> to vector<32x8xf32>
    %87 = arith.addf %83, %86 : vector<32x8xf32>
    %cst_57 = arith.constant 0.000000e+00 : f32
    %88 = vector.broadcast %cst_57 : f32 to vector<32x8xf32>
    %89 = arith.cmpf oge, %87, %88 : vector<32x8xf32>
    %cst_58 = arith.constant 0.00999999977 : f32
    %90 = vector.broadcast %cst_58 : f32 to vector<32x8xf32>
    %91 = arith.mulf %90, %87 : vector<32x8xf32>
    %92 = arith.select %89, %87, %91 : vector<32x8xi1>, vector<32x8xf32>
    %c6 = arith.constant 6 : index
    %c0_59 = arith.constant 0 : index
    %c0_60 = arith.constant 0 : index
    %93 = vector.load %arg4[%c6, %c0_59, %c0_60] : memref<7x32x32xf32, #tpu.memory_space<vmem>>, vector<1x32x32xf32>
    %94 = vector.shape_cast %93 : vector<1x32x32xf32> to vector<32x32xf32>
    %cst_61 = arith.constant dense<0.000000e+00> : vector<32x8xf32>
    %95 = tpu.matmul %94, %92, %cst_61 {dimension_numbers = #tpu.dot_dimension_numbers<[1], [0], [0], [1], [0, 0, 1, 1], [], []>} : vector<32x32xf32>, vector<32x8xf32>, vector<32x8xf32> -> vector<32x8xf32>
    %c6_62 = arith.constant 6 : index
    %c0_63 = arith.constant 0 : index
    %c0_64 = arith.constant 0 : index
    %96 = vector.load %arg5[%c6_62, %c0_63, %c0_64] : memref<7x32x1xf32, #tpu.memory_space<vmem>>, vector<1x32x1xf32>
    %97 = vector.shape_cast %96 : vector<1x32x1xf32> to vector<32x1xf32>
    %98 = vector.broadcast %97 : vector<32x1xf32> to vector<32x8xf32>
    %99 = arith.addf %95, %98 : vector<32x8xf32>
    %cst_65 = arith.constant 0.000000e+00 : f32
    %100 = vector.broadcast %cst_65 : f32 to vector<32x8xf32>
    %101 = arith.cmpf oge, %99, %100 : vector<32x8xf32>
    %cst_66 = arith.constant 0.00999999977 : f32
    %102 = vector.broadcast %cst_66 : f32 to vector<32x8xf32>
    %103 = arith.mulf %102, %99 : vector<32x8xf32>
    %104 = arith.select %101, %99, %103 : vector<32x8xi1>, vector<32x8xf32>
    %c0_67 = arith.constant 0 : index
    %c0_68 = arith.constant 0 : index
    %105 = vector.load %arg6[%c0_67, %c0_68] : memref<32x8xf32, #tpu.memory_space<vmem>>, vector<32x8xf32>
    tpu.vector_store %arg6[%c0_67, %c0_68], %104 {strides = array<i32>} : memref<32x8xf32, #tpu.memory_space<vmem>>, vector<32x8xf32>,
    return
  }
  func.func @transform_0(%arg0: i32) -> (i32, i32) {
    %c0_i32 = arith.constant 0 : i32
    %c0_i32_0 = arith.constant 0 : i32
    return %c0_i32, %arg0 : i32, i32
  }
  func.func @transform_1(%arg0: i32) -> (i32, i32) {
    %c0_i32 = arith.constant 0 : i32
    %c0_i32_0 = arith.constant 0 : i32
    %c0_i32_1 = arith.constant 0 : i32
    return %c0_i32, %c0_i32_0 : i32, i32
  }
  func.func @transform_2(%arg0: i32) -> (i32, i32) {
    %c0_i32 = arith.constant 0 : i32
    %c0_i32_0 = arith.constant 0 : i32
    %c0_i32_1 = arith.constant 0 : i32
    return %c0_i32, %c0_i32_0 : i32, i32
  }
  func.func @transform_3(%arg0: i32) -> (i32, i32, i32) {
    %c0_i32 = arith.constant 0 : i32
    %c0_i32_0 = arith.constant 0 : i32
    %c0_i32_1 = arith.constant 0 : i32
    %c0_i32_2 = arith.constant 0 : i32
    return %c0_i32, %c0_i32_0, %c0_i32_1 : i32, i32, i32
  }
  func.func @transform_4(%arg0: i32) -> (i32, i32, i32) {
    %c0_i32 = arith.constant 0 : i32
    %c0_i32_0 = arith.constant 0 : i32
    %c0_i32_1 = arith.constant 0 : i32
    %c0_i32_2 = arith.constant 0 : i32
    return %c0_i32, %c0_i32_0, %c0_i32_1 : i32, i32, i32
  }
  func.func @transform_5(%arg0: i32) -> (i32, i32) {
    %c0_i32 = arith.constant 0 : i32
    %c0_i32_0 = arith.constant 0 : i32
    return %c0_i32, %arg0 : i32, i32
  }
}

</mosaic_0001>

<llo_original>
// kernel: tpu_custom_call.1
$region0: #{tpu_custom_call.1}
  #allocation0 [shape = 'u32[]', space=smem, size = 0x4, offset = 0x4, fixed_abs, tag = 'smem constant byte address 0x4 - core index']
  #allocation1 [shape = 'u32[144,128]{1,0:T(1,128)}', space=vmem, size = 0x12000, scoped, tag = 'internal scratch']
  %s0 = inlined_call_operand.vmem [shape: f32[32,8], index: 0, kind: input, shape index: {}]
  %s1 = inlined_call_operand.vmem [shape: f32[32,32], index: 1, kind: input, shape index: {}]
  %s2 = inlined_call_operand.vmem [shape: f32[32,1], index: 2, kind: input, shape index: {}]
  %s3 = inlined_call_operand.vmem [shape: f32[7,32,32], index: 3, kind: input, shape index: {}]
  %s4 = inlined_call_operand.vmem [shape: f32[7,32,1], index: 4, kind: input, shape index: {}]
  %s5 = inlined_call_operand.vmem [shape: f32[32,8], index: 5, kind: output, shape index: {}]
  %s6 = sld [smem:[#allocation0]]
  $region30: #{tpu_custom_call.1} parent=0
    _
  %s8 = ssub.s32 1, %s6
  %s9 = scalar_select 0, %s8, %s6
  // Predicated region
  $region2: #{tpu_custom_call.1} parent=0 // pred_check
    _
  $region3: #{tpu_custom_call.1} parent=0 // pred_check_branch
    %11 = sbr.rel (0) target = $region5
  $region4: #{tpu_custom_call.1} parent=0 // pred_region
    _
  $region5: #{tpu_custom_call.1} parent=0 // pred_fallthru
    _
  // Predicated region
  $region6: #{tpu_custom_call.1} parent=0 // pred_check
    _
  $region7: #{tpu_custom_call.1} parent=0 // pred_check_branch
    %13 = sbr.rel (0) target = $region9
  $region8: #{tpu_custom_call.1} parent=0 // pred_region
    _
  $region9: #{tpu_custom_call.1} parent=0 // pred_fallthru
    _
  // Predicated region
  $region10: #{tpu_custom_call.1} parent=0 // pred_check
    _
  $region11: #{tpu_custom_call.1} parent=0 // pred_check_branch
    %15 = sbr.rel (0) target = $region13
  $region12: #{tpu_custom_call.1} parent=0 // pred_region
    _
  $region13: #{tpu_custom_call.1} parent=0 // pred_fallthru
    _
  // Predicated region
  $region14: #{tpu_custom_call.1} parent=0 // pred_check
    _
  $region15: #{tpu_custom_call.1} parent=0 // pred_check_branch
    %17 = sbr.rel (0) target = $region17
  $region16: #{tpu_custom_call.1} parent=0 // pred_region
    _
  $region17: #{tpu_custom_call.1} parent=0 // pred_fallthru
    _
  // Predicated region
  $region18: #{tpu_custom_call.1} parent=0 // pred_check
    _
  $region19: #{tpu_custom_call.1} parent=0 // pred_check_branch
    %19 = sbr.rel (0) target = $region21
  $region20: #{tpu_custom_call.1} parent=0 // pred_region
    _
  $region21: #{tpu_custom_call.1} parent=0 // pred_fallthru
    _
  %v20 = vld [vmem:[%s0] sm:$0xff]
  %v21 = vld [vmem:[%s0 + $0x8] sm:$0xff]
  %v22 = vld [vmem:[%s0 + $0x10] sm:$0xff]
  %v23 = vld [vmem:[%s0 + $0x18] sm:$0xff]
  %v24 = vmul.f32 %v20, %v20
  %v25 = vmul.f32 %v21, %v21
  %v26 = vmul.f32 %v22, %v22
  %v27 = vmul.f32 %v23, %v23
  %vm28 = vcmask 64512
  %v29 = vsel %vm28, %v24, 0.0
  %v30 = vsel %vm28, %v25, 0.0
  %v31 = vadd.f32 %v29, %v30
  %v32 = vsel %vm28, %v26, 0.0
  %v33 = vadd.f32 %v31, %v32
  %v34 = vsel %vm28, %v27, 0.0
  %v35 = vadd.f32 %v33, %v34
  %v36 = vrot.slane %v35, 4
  %v37 = vadd.f32 %v35, %v36
  %v38 = vrot.slane %v37, 2
  %v39 = vadd.f32 %v37, %v38
  %v40 = vrot.slane %v39, 1
  %v41 = vadd.f32 %v39, %v40
  %v42 = vrcp.pop 32.0
  %v43 = vmul.f32 %v41, %v42
  %v44 = vadd.f32 %v43, 1e-08
  %v45 = vrsqrt.pop %v44
  %v46 = vmul.f32 %v20, %v45
  %v47 = vmul.f32 %v21, %v45
  %v48 = vmul.f32 %v22, %v45
  %v49 = vmul.f32 %v23, %v45
  %v50 = vld [vmem:[%s1] sm:$0xff]
  %v51 = vld [vmem:[%s1 + $0x8] sm:$0xff]
  %v52 = vld [vmem:[%s1 + $0x10] sm:$0xff]
  %v53 = vld [vmem:[%s1 + $0x18] sm:$0xff]
  %v54 = vld [vmem:[%s2] sm:$0xff]
  %v55 = vld [vmem:[%s2 + $0x8] sm:$0xff]
  %v56 = vld [vmem:[%s2 + $0x10] sm:$0xff]
  %v57 = vld [vmem:[%s2 + $0x18] sm:$0xff]
  %59 = vset.pattern.permute.xlu0 0
  %60 = vperm.xlu0 %59, %v54
  %v61 = vpop.permute.xlu0 %60
  %64 = vset.pattern.permute.xlu0 0
  %65 = vperm.xlu0 %64, %v55
  %v66 = vpop.permute.xlu0 %65
  %69 = vset.pattern.permute.xlu0 0
  %70 = vperm.xlu0 %69, %v56
  %v71 = vpop.permute.xlu0 %70
  %74 = vset.pattern.permute.xlu0 0
  %75 = vperm.xlu0 %74, %v57
  %v76 = vpop.permute.xlu0 %75
  %vm78 = vcmask 261120
  %v80 = vsel %vm78, %v50, 0
  %v83 = vsel %vm78, %v51, 0
  %v86 = vsel %vm78, %v52, 0
  %v89 = vsel %vm78, %v53, 0
  %91 = vmatprep.subr.mxu0 0.0
  %92 = vmatpush1.msra.mxu0 %v46
  %93 = vmatprep.subr.mxu0 0.0
  %94 = vmatpush1.msra.mxu0 %v47
  %95 = vmatprep.subr.mxu0 0.0
  %96 = vmatpush1.msra.mxu0 %v48
  %97 = vmatprep.subr.mxu0 0.0
  %98 = vmatpush1.msra.mxu0 %v49
  %99 = vmatprep.subr.mxu0 0.0
  %100 = vmatpush1.msra.mxu0 0.0
  %101 = vmatprep.subr.mxu0 0.0
  %102 = vmatpush1.msra.mxu0 0.0
  %103 = vmatprep.subr.mxu0 0.0
  %104 = vmatpush1.msra.mxu0 0.0
  %105 = vmatprep.subr.mxu0 0.0
  %106 = vmatpush1.msra.mxu0 0.0
  %107 = vmatprep.subr.mxu0 0.0
  %108 = vmatpush1.msra.mxu0 0.0
  %109 = vmatprep.subr.mxu0 0.0
  %110 = vmatpush1.msra.mxu0 0.0
  %111 = vmatprep.subr.mxu0 0.0
  %112 = vmatpush1.msra.mxu0 0.0
  %113 = vmatprep.subr.mxu0 0.0
  %114 = vmatpush1.msra.mxu0 0.0
  %115 = vmatprep.subr.mxu0 0.0
  %116 = vmatpush1.msra.mxu0 0.0
  %117 = vmatprep.subr.mxu0 0.0
  %118 = vmatpush1.msra.mxu0 0.0
  %119 = vmatprep.subr.mxu0 0.0
  %120 = vmatpush1.msra.mxu0 0.0
  %121 = vmatprep.subr.mxu0 0.0
  %122 = vmatpush1.msra.mxu0 0.0
  %123 = vmatprep.subr.mxu0 0.0
  %124 = vmatpush1.msra.mxu0 0.0
  %125 = vmatprep.subr.mxu0 0.0
  %126 = vmatpush1.msra.mxu0 0.0
  %127 = vmatprep.subr.mxu0 0.0
  %128 = vmatpush1.msra.mxu0 0.0
  %129 = vmatprep.subr.mxu0 0.0
  %130 = vmatpush1.msra.mxu0 0.0
  %131 = vmatprep.subr.mxu0 0.0
  %132 = vmatpush1.msra.mxu0 0.0
  %133 = vmatprep.subr.mxu0 0.0
  %134 = vmatpush1.msra.mxu0 0.0
  %135 = vmatprep.subr.mxu0 0.0
  %136 = vmatpush1.msra.mxu0 0.0
  %137 = vmatprep.subr.mxu0 0.0
  %138 = vmatpush1.msra.mxu0 0.0
  %139 = vmatprep.subr.mxu0 0.0
  %140 = vmatpush1.msra.mxu0 0.0
  %141 = vmatprep.subr.mxu0 0.0
  %142 = vmatpush1.msra.mxu0 0.0
  %143 = vmatprep.subr.mxu0 0.0
  %144 = vmatpush1.msra.mxu0 0.0
  %145 = vmatprep.subr.mxu0 0.0
  %146 = vmatpush1.msra.mxu0 0.0
  %147 = vmatprep.subr.mxu0 0.0
  %148 = vmatpush1.msra.mxu0 0.0
  %149 = vmatprep.subr.mxu0 0.0
  %150 = vmatpush1.msra.mxu0 0.0
  %151 = vmatprep.subr.mxu0 0.0
  %152 = vmatpush1.msra.mxu0 0.0
  %153 = vmatprep.subr.mxu0 0.0
  %154 = vmatpush1.msra.mxu0 0.0
  %155 = vmatprep.mubr.f32.mxu0 0.0
  %156 = vmatmul.mubr.f32.gmra.mrb[0].mxu0 %v80
  %v157 = vpop.f32.mrb[0].mxu0
  %v158 = vadd.f32 %v61, %v157
  %v159 = vpop.f32.mrb[0].mxu0
  %160 = vmatprep.mubr.f32.mxu0 0.0
  %161 = vmatmul.mubr.f32.gmra.mrb[0].mxu0 %v83
  %v162 = vpop.f32.mrb[0].mxu0
  %v163 = vadd.f32 %v66, %v162
  %v164 = vpop.f32.mrb[0].mxu0
  %165 = vmatprep.mubr.f32.mxu0 0.0
  %166 = vmatmul.mubr.f32.gmra.mrb[0].mxu0 %v86
  %v167 = vpop.f32.mrb[0].mxu0
  %v168 = vadd.f32 %v71, %v167
  %v169 = vpop.f32.mrb[0].mxu0
  %170 = vmatprep.mubr.f32.mxu0 0.0
  %171 = vmatmul.mubr.f32.gmra.mrb[0].mxu0 %v89
  %v172 = vpop.f32.mrb[0].mxu0
  %v173 = vadd.f32 %v76, %v172
  %v174 = vpop.f32.mrb[0].mxu0
  %175 = vdwg.mxu0
  %vm176 = vcmp.ge.f32.partialorder %v158, 0.0
  %vm177 = vcmp.ge.f32.partialorder %v163, 0.0
  %vm178 = vcmp.ge.f32.partialorder %v168, 0.0
  %vm179 = vcmp.ge.f32.partialorder %v173, 0.0
  %v180 = vmul.f32 %v158, 0.01
  %v181 = vmul.f32 %v163, 0.01
  %v182 = vmul.f32 %v168, 0.01
  %v183 = vmul.f32 %v173, 0.01
  %v184 = vsel %vm176, %v158, %v180
  %v185 = vsel %vm177, %v163, %v181
  %v186 = vsel %vm178, %v168, %v182
  %v187 = vsel %vm179, %v173, %v183
  %v188 = vld [vmem:[%s3] sm:$0xff]
  %v189 = vld [vmem:[%s3 + $0x8] sm:$0xff]
  %v190 = vld [vmem:[%s3 + $0x10] sm:$0xff]
  %v191 = vld [vmem:[%s3 + $0x18] sm:$0xff]
  %v192 = vld [vmem:[%s4] sm:$0xff]
  %v193 = vld [vmem:[%s4 + $0x8] sm:$0xff]
  %v194 = vld [vmem:[%s4 + $0x10] sm:$0xff]
  %v195 = vld [vmem:[%s4 + $0x18] sm:$0xff]
  %197 = vset.pattern.permute.xlu0 0
  %198 = vperm.xlu0 %197, %v192
  %v199 = vpop.permute.xlu0 %198
  %202 = vset.pattern.permute.xlu0 0
  %203 = vperm.xlu0 %202, %v193
  %v204 = vpop.permute.xlu0 %203
  %207 = vset.pattern.permute.xlu0 0
  %208 = vperm.xlu0 %207, %v194
  %v209 = vpop.permute.xlu0 %208
  %212 = vset.pattern.permute.xlu0 0
  %213 = vperm.xlu0 %212, %v195
  %v214 = vpop.permute.xlu0 %213
  %v217 = vsel %vm78, %v188, 0
  %v220 = vsel %vm78, %v189, 0
  %v223 = vsel %vm78, %v190, 0
  %v226 = vsel %vm78, %v191, 0
  %228 = vmatprep.subr.mxu0 0.0
  %229 = vmatpush1.msra.mxu0 %v184
  %230 = vmatprep.subr.mxu0 0.0
  %231 = vmatpush1.msra.mxu0 %v185
  %232 = vmatprep.subr.mxu0 0.0
  %233 = vmatpush1.msra.mxu0 %v186
  %234 = vmatprep.subr.mxu0 0.0
  %235 = vmatpush1.msra.mxu0 %v187
  %236 = vmatprep.subr.mxu0 0.0
  %237 = vmatpush1.msra.mxu0 0.0
  %238 = vmatprep.subr.mxu0 0.0
  %239 = vmatpush1.msra.mxu0 0.0
  %240 = vmatprep.subr.mxu0 0.0
  %241 = vmatpush1.msra.mxu0 0.0
  %242 = vmatprep.subr.mxu0 0.0
  %243 = vmatpush1.msra.mxu0 0.0
  %244 = vmatprep.subr.mxu0 0.0
  %245 = vmatpush1.msra.mxu0 0.0
  %246 = vmatprep.subr.mxu0 0.0
  %247 = vmatpush1.msra.mxu0 0.0
  %248 = vmatprep.subr.mxu0 0.0
  %249 = vmatpush1.msra.mxu0 0.0
  %250 = vmatprep.subr.mxu0 0.0
  %251 = vmatpush1.msra.mxu0 0.0
  %252 = vmatprep.subr.mxu0 0.0
  %253 = vmatpush1.msra.mxu0 0.0
  %254 = vmatprep.subr.mxu0 0.0
  %255 = vmatpush1.msra.mxu0 0.0
  %256 = vmatprep.subr.mxu0 0.0
  %257 = vmatpush1.msra.mxu0 0.0
  %258 = vmatprep.subr.mxu0 0.0
  %259 = vmatpush1.msra.mxu0 0.0
  %260 = vmatprep.subr.mxu0 0.0
  %261 = vmatpush1.msra.mxu0 0.0
  %262 = vmatprep.subr.mxu0 0.0
  %263 = vmatpush1.msra.mxu0 0.0
  %264 = vmatprep.subr.mxu0 0.0
  %265 = vmatpush1.msra.mxu0 0.0
  %266 = vmatprep.subr.mxu0 0.0
  %267 = vmatpush1.msra.mxu0 0.0
  %268 = vmatprep.subr.mxu0 0.0
  %269 = vmatpush1.msra.mxu0 0.0
  %270 = vmatprep.subr.mxu0 0.0
  %271 = vmatpush1.msra.mxu0 0.0
  %272 = vmatprep.subr.mxu0 0.0
  %273 = vmatpush1.msra.mxu0 0.0
  %274 = vmatprep.subr.mxu0 0.0
  %275 = vmatpush1.msra.mxu0 0.0
  %276 = vmatprep.subr.mxu0 0.0
  %277 = vmatpush1.msra.mxu0 0.0
  %278 = vmatprep.subr.mxu0 0.0
  %279 = vmatpush1.msra.mxu0 0.0
  %280 = vmatprep.subr.mxu0 0.0
  %281 = vmatpush1.msra.mxu0 0.0
  %282 = vmatprep.subr.mxu0 0.0
  %283 = vmatpush1.msra.mxu0 0.0
  %284 = vmatprep.subr.mxu0 0.0
  %285 = vmatpush1.msra.mxu0 0.0
  %286 = vmatprep.subr.mxu0 0.0
  %287 = vmatpush1.msra.mxu0 0.0
  %288 = vmatprep.subr.mxu0 0.0
  %289 = vmatpush1.msra.mxu0 0.0
  %290 = vmatprep.subr.mxu0 0.0
  %291 = vmatpush1.msra.mxu0 0.0
  %292 = vmatprep.mubr.f32.mxu0 0.0
  %293 = vmatmul.mubr.f32.gmra.mrb[0].mxu0 %v217
  %v294 = vpop.f32.mrb[0].mxu0
  %v295 = vadd.f32 %v199, %v294
  %v296 = vpop.f32.mrb[0].mxu0
  %297 = vmatprep.mubr.f32.mxu0 0.0
  %298 = vmatmul.mubr.f32.gmra.mrb[0].mxu0 %v220
  %v299 = vpop.f32.mrb[0].mxu0
  %v300 = vadd.f32 %v204, %v299
  %v301 = vpop.f32.mrb[0].mxu0
  %302 = vmatprep.mubr.f32.mxu0 0.0
  %303 = vmatmul.mubr.f32.gmra.mrb[0].mxu0 %v223
  %v304 = vpop.f32.mrb[0].mxu0
  %v305 = vadd.f32 %v209, %v304
  %v306 = vpop.f32.mrb[0].mxu0
  %307 = vmatprep.mubr.f32.mxu0 0.0
  %308 = vmatmul.mubr.f32.gmra.mrb[0].mxu0 %v226
  %v309 = vpop.f32.mrb[0].mxu0
  %v310 = vadd.f32 %v214, %v309
  %v311 = vpop.f32.mrb[0].mxu0
  %312 = vdwg.mxu0
  %vm313 = vcmp.ge.f32.partialorder %v295, 0.0
  %vm314 = vcmp.ge.f32.partialorder %v300, 0.0
  %vm315 = vcmp.ge.f32.partialorder %v305, 0.0
  %vm316 = vcmp.ge.f32.partialorder %v310, 0.0
  %v317 = vmul.f32 %v295, 0.01
  %v318 = vmul.f32 %v300, 0.01
  %v319 = vmul.f32 %v305, 0.01
  %v320 = vmul.f32 %v310, 0.01
  %v321 = vsel %vm313, %v295, %v317
  %v322 = vsel %vm314, %v300, %v318
  %v323 = vsel %vm315, %v305, %v319
  %v324 = vsel %vm316, %v310, %v320
  %s325 = scalar_lea.vmem %s3, 32
  %v326 = vld [vmem:[%s325] sm:$0xff]
  %v327 = vld [vmem:[%s325 + $0x8] sm:$0xff]
  %v328 = vld [vmem:[%s325 + $0x10] sm:$0xff]
  %v329 = vld [vmem:[%s325 + $0x18] sm:$0xff]
  %s330 = scalar_lea.vmem %s4, 32
  %v331 = vld [vmem:[%s330] sm:$0xff]
  %v332 = vld [vmem:[%s330 + $0x8] sm:$0xff]
  %v333 = vld [vmem:[%s330 + $0x10] sm:$0xff]
  %v334 = vld [vmem:[%s330 + $0x18] sm:$0xff]
  %336 = vset.pattern.permute.xlu0 0
  %337 = vperm.xlu0 %336, %v331
  %v338 = vpop.permute.xlu0 %337
  %341 = vset.pattern.permute.xlu0 0
  %342 = vperm.xlu0 %341, %v332
  %v343 = vpop.permute.xlu0 %342
  %346 = vset.pattern.permute.xlu0 0
  %347 = vperm.xlu0 %346, %v333
  %v348 = vpop.permute.xlu0 %347
  %351 = vset.pattern.permute.xlu0 0
  %352 = vperm.xlu0 %351, %v334
  %v353 = vpop.permute.xlu0 %352
  %v356 = vsel %vm78, %v326, 0
  %v359 = vsel %vm78, %v327, 0
  %v362 = vsel %vm78, %v328, 0
  %v365 = vsel %vm78, %v329, 0
  %367 = vmatprep.subr.mxu0 0.0
  %368 = vmatpush1.msra.mxu0 %v321
  %369 = vmatprep.subr.mxu0 0.0
  %370 = vmatpush1.msra.mxu0 %v322
  %371 = vmatprep.subr.mxu0 0.0
  %372 = vmatpush1.msra.mxu0 %v323
  %373 = vmatprep.subr.mxu0 0.0
  %374 = vmatpush1.msra.mxu0 %v324
  %375 = vmatprep.subr.mxu0 0.0
  %376 = vmatpush1.msra.mxu0 0.0
  %377 = vmatprep.subr.mxu0 0.0
  %378 = vmatpush1.msra.mxu0 0.0
  %379 = vmatprep.subr.mxu0 0.0
  %380 = vmatpush1.msra.mxu0 0.0
  %381 = vmatprep.subr.mxu0 0.0
  %382 = vmatpush1.msra.mxu0 0.0
  %383 = vmatprep.subr.mxu0 0.0
  %384 = vmatpush1.msra.mxu0 0.0
  %385 = vmatprep.subr.mxu0 0.0
  %386 = vmatpush1.msra.mxu0 0.0
  %387 = vmatprep.subr.mxu0 0.0
  %388 = vmatpush1.msra.mxu0 0.0
  %389 = vmatprep.subr.mxu0 0.0
  %390 = vmatpush1.msra.mxu0 0.0
  %391 = vmatprep.subr.mxu0 0.0
  %392 = vmatpush1.msra.mxu0 0.0
  %393 = vmatprep.subr.mxu0 0.0
  %394 = vmatpush1.msra.mxu0 0.0
  %395 = vmatprep.subr.mxu0 0.0
  %396 = vmatpush1.msra.mxu0 0.0
  %397 = vmatprep.subr.mxu0 0.0
  %398 = vmatpush1.msra.mxu0 0.0
  %399 = vmatprep.subr.mxu0 0.0
  %400 = vmatpush1.msra.mxu0 0.0
  %401 = vmatprep.subr.mxu0 0.0
  %402 = vmatpush1.msra.mxu0 0.0
  %403 = vmatprep.subr.mxu0 0.0
  %404 = vmatpush1.msra.mxu0 0.0
  %405 = vmatprep.subr.mxu0 0.0
  %406 = vmatpush1.msra.mxu0 0.0
  %407 = vmatprep.subr.mxu0 0.0
  %408 = vmatpush1.msra.mxu0 0.0
  %409 = vmatprep.subr.mxu0 0.0
  %410 = vmatpush1.msra.mxu0 0.0
  %411 = vmatprep.subr.mxu0 0.0
  %412 = vmatpush1.msra.mxu0 0.0
  %413 = vmatprep.subr.mxu0 0.0
  %414 = vmatpush1.msra.mxu0 0.0
  %415 = vmatprep.subr.mxu0 0.0
  %416 = vmatpush1.msra.mxu0 0.0
  %417 = vmatprep.subr.mxu0 0.0
  %418 = vmatpush1.msra.mxu0 0.0
  %419 = vmatprep.subr.mxu0 0.0
  %420 = vmatpush1.msra.mxu0 0.0
  %421 = vmatprep.subr.mxu0 0.0
  %422 = vmatpush1.msra.mxu0 0.0
  %423 = vmatprep.subr.mxu0 0.0
  %424 = vmatpush1.msra.mxu0 0.0
  %425 = vmatprep.subr.mxu0 0.0
  %426 = vmatpush1.msra.mxu0 0.0
  %427 = vmatprep.subr.mxu0 0.0
  %428 = vmatpush1.msra.mxu0 0.0
  %429 = vmatprep.subr.mxu0 0.0
  %430 = vmatpush1.msra.mxu0 0.0
  %431 = vmatprep.mubr.f32.mxu0 0.0
  %432 = vmatmul.mubr.f32.gmra.mrb[0].mxu0 %v356
  %v433 = vpop.f32.mrb[0].mxu0
  %v434 = vadd.f32 %v338, %v433
  %v435 = vpop.f32.mrb[0].mxu0
  %436 = vmatprep.mubr.f32.mxu0 0.0
  %437 = vmatmul.mubr.f32.gmra.mrb[0].mxu0 %v359
  %v438 = vpop.f32.mrb[0].mxu0
  %v439 = vadd.f32 %v343, %v438
  %v440 = vpop.f32.mrb[0].mxu0
  %441 = vmatprep.mubr.f32.mxu0 0.0
  %442 = vmatmul.mubr.f32.gmra.mrb[0].mxu0 %v362
  %v443 = vpop.f32.mrb[0].mxu0
  %v444 = vadd.f32 %v348, %v443
  %v445 = vpop.f32.mrb[0].mxu0
  %446 = vmatprep.mubr.f32.mxu0 0.0
  %447 = vmatmul.mubr.f32.gmra.mrb[0].mxu0 %v365
  %v448 = vpop.f32.mrb[0].mxu0
  %v449 = vadd.f32 %v353, %v448
  %v450 = vpop.f32.mrb[0].mxu0
  %451 = vdwg.mxu0
  %vm452 = vcmp.ge.f32.partialorder %v434, 0.0
  %vm453 = vcmp.ge.f32.partialorder %v439, 0.0
  %vm454 = vcmp.ge.f32.partialorder %v444, 0.0
  %vm455 = vcmp.ge.f32.partialorder %v449, 0.0
  %v456 = vmul.f32 %v434, 0.01
  %v457 = vmul.f32 %v439, 0.01
  %v458 = vmul.f32 %v444, 0.01
  %v459 = vmul.f32 %v449, 0.01
  %v460 = vsel %vm452, %v434, %v456
  %v461 = vsel %vm453, %v439, %v457
  %v462 = vsel %vm454, %v444, %v458
  %v463 = vsel %vm455, %v449, %v459
  %s464 = scalar_lea.vmem %s3, 64
  %v465 = vld [vmem:[%s464] sm:$0xff]
  %v466 = vld [vmem:[%s464 + $0x8] sm:$0xff]
  %v467 = vld [vmem:[%s464 + $0x10] sm:$0xff]
  %v468 = vld [vmem:[%s464 + $0x18] sm:$0xff]
  %s469 = scalar_lea.vmem %s4, 64
  %v470 = vld [vmem:[%s469] sm:$0xff]
  %v471 = vld [vmem:[%s469 + $0x8] sm:$0xff]
  %v472 = vld [vmem:[%s469 + $0x10] sm:$0xff]
  %v473 = vld [vmem:[%s469 + $0x18] sm:$0xff]
  %475 = vset.pattern.permute.xlu0 0
  %476 = vperm.xlu0 %475, %v470
  %v477 = vpop.permute.xlu0 %476
  %480 = vset.pattern.permute.xlu0 0
  %481 = vperm.xlu0 %480, %v471
  %v482 = vpop.permute.xlu0 %481
  %485 = vset.pattern.permute.xlu0 0
  %486 = vperm.xlu0 %485, %v472
  %v487 = vpop.permute.xlu0 %486
  %490 = vset.pattern.permute.xlu0 0
  %491 = vperm.xlu0 %490, %v473
  %v492 = vpop.permute.xlu0 %491
  %v495 = vsel %vm78, %v465, 0
  %v498 = vsel %vm78, %v466, 0
  %v501 = vsel %vm78, %v467, 0
  %v504 = vsel %vm78, %v468, 0
  %506 = vmatprep.subr.mxu0 0.0
  %507 = vmatpush1.msra.mxu0 %v460
  %508 = vmatprep.subr.mxu0 0.0
  %509 = vmatpush1.msra.mxu0 %v461
  %510 = vmatprep.subr.mxu0 0.0
  %511 = vmatpush1.msra.mxu0 %v462
  %512 = vmatprep.subr.mxu0 0.0
  %513 = vmatpush1.msra.mxu0 %v463
  %514 = vmatprep.subr.mxu0 0.0
  %515 = vmatpush1.msra.mxu0 0.0
  %516 = vmatprep.subr.mxu0 0.0
  %517 = vmatpush1.msra.mxu0 0.0
  %518 = vmatprep.subr.mxu0 0.0
  %519 = vmatpush1.msra.mxu0 0.0
  %520 = vmatprep.subr.mxu0 0.0
  %521 = vmatpush1.msra.mxu0 0.0
  %522 = vmatprep.subr.mxu0 0.0
  %523 = vmatpush1.msra.mxu0 0.0
  %524 = vmatprep.subr.mxu0 0.0
  %525 = vmatpush1.msra.mxu0 0.0
  %526 = vmatprep.subr.mxu0 0.0
  %527 = vmatpush1.msra.mxu0 0.0
  %528 = vmatprep.subr.mxu0 0.0
  %529 = vmatpush1.msra.mxu0 0.0
  %530 = vmatprep.subr.mxu0 0.0
  %531 = vmatpush1.msra.mxu0 0.0
  %532 = vmatprep.subr.mxu0 0.0
  %533 = vmatpush1.msra.mxu0 0.0
  %534 = vmatprep.subr.mxu0 0.0
  %535 = vmatpush1.msra.mxu0 0.0
  %536 = vmatprep.subr.mxu0 0.0
  %537 = vmatpush1.msra.mxu0 0.0
  %538 = vmatprep.subr.mxu0 0.0
  %539 = vmatpush1.msra.mxu0 0.0
  %540 = vmatprep.subr.mxu0 0.0
  %541 = vmatpush1.msra.mxu0 0.0
  %542 = vmatprep.subr.mxu0 0.0
  %543 = vmatpush1.msra.mxu0 0.0
  %544 = vmatprep.subr.mxu0 0.0
  %545 = vmatpush1.msra.mxu0 0.0
  %546 = vmatprep.subr.mxu0 0.0
  %547 = vmatpush1.msra.mxu0 0.0
  %548 = vmatprep.subr.mxu0 0.0
  %549 = vmatpush1.msra.mxu0 0.0
  %550 = vmatprep.subr.mxu0 0.0
  %551 = vmatpush1.msra.mxu0 0.0
  %552 = vmatprep.subr.mxu0 0.0
  %553 = vmatpush1.msra.mxu0 0.0
  %554 = vmatprep.subr.mxu0 0.0
  %555 = vmatpush1.msra.mxu0 0.0
  %556 = vmatprep.subr.mxu0 0.0
  %557 = vmatpush1.msra.mxu0 0.0
  %558 = vmatprep.subr.mxu0 0.0
  %559 = vmatpush1.msra.mxu0 0.0
  %560 = vmatprep.subr.mxu0 0.0
  %561 = vmatpush1.msra.mxu0 0.0
  %562 = vmatprep.subr.mxu0 0.0
  %563 = vmatpush1.msra.mxu0 0.0
  %564 = vmatprep.subr.mxu0 0.0
  %565 = vmatpush1.msra.mxu0 0.0
  %566 = vmatprep.subr.mxu0 0.0
  %567 = vmatpush1.msra.mxu0 0.0
  %568 = vmatprep.subr.mxu0 0.0
  %569 = vmatpush1.msra.mxu0 0.0
  %570 = vmatprep.mubr.f32.mxu0 0.0
  %571 = vmatmul.mubr.f32.gmra.mrb[0].mxu0 %v495
  %v572 = vpop.f32.mrb[0].mxu0
  %v573 = vadd.f32 %v477, %v572
  %v574 = vpop.f32.mrb[0].mxu0
  %575 = vmatprep.mubr.f32.mxu0 0.0
  %576 = vmatmul.mubr.f32.gmra.mrb[0].mxu0 %v498
  %v577 = vpop.f32.mrb[0].mxu0
  %v578 = vadd.f32 %v482, %v577
  %v579 = vpop.f32.mrb[0].mxu0
  %580 = vmatprep.mubr.f32.mxu0 0.0
  %581 = vmatmul.mubr.f32.gmra.mrb[0].mxu0 %v501
  %v582 = vpop.f32.mrb[0].mxu0
  %v583 = vadd.f32 %v487, %v582
  %v584 = vpop.f32.mrb[0].mxu0
  %585 = vmatprep.mubr.f32.mxu0 0.0
  %586 = vmatmul.mubr.f32.gmra.mrb[0].mxu0 %v504
  %v587 = vpop.f32.mrb[0].mxu0
  %v588 = vadd.f32 %v492, %v587
  %v589 = vpop.f32.mrb[0].mxu0
  %590 = vdwg.mxu0
  %vm591 = vcmp.ge.f32.partialorder %v573, 0.0
  %vm592 = vcmp.ge.f32.partialorder %v578, 0.0
  %vm593 = vcmp.ge.f32.partialorder %v583, 0.0
  %vm594 = vcmp.ge.f32.partialorder %v588, 0.0
  %v595 = vmul.f32 %v573, 0.01
  %v596 = vmul.f32 %v578, 0.01
  %v597 = vmul.f32 %v583, 0.01
  %v598 = vmul.f32 %v588, 0.01
  %v599 = vsel %vm591, %v573, %v595
  %v600 = vsel %vm592, %v578, %v596
  %v601 = vsel %vm593, %v583, %v597
  %v602 = vsel %vm594, %v588, %v598
  %s603 = scalar_lea.vmem %s3, 96
  %v604 = vld [vmem:[%s603] sm:$0xff]
  %v605 = vld [vmem:[%s603 + $0x8] sm:$0xff]
  %v606 = vld [vmem:[%s603 + $0x10] sm:$0xff]
  %v607 = vld [vmem:[%s603 + $0x18] sm:$0xff]
  %s608 = scalar_lea.vmem %s4, 96
  %v609 = vld [vmem:[%s608] sm:$0xff]
  %v610 = vld [vmem:[%s608 + $0x8] sm:$0xff]
  %v611 = vld [vmem:[%s608 + $0x10] sm:$0xff]
  %v612 = vld [vmem:[%s608 + $0x18] sm:$0xff]
  %614 = vset.pattern.permute.xlu0 0
  %615 = vperm.xlu0 %614, %v609
  %v616 = vpop.permute.xlu0 %615
  %619 = vset.pattern.permute.xlu0 0
  %620 = vperm.xlu0 %619, %v610
  %v621 = vpop.permute.xlu0 %620
  %624 = vset.pattern.permute.xlu0 0
  %625 = vperm.xlu0 %624, %v611
  %v626 = vpop.permute.xlu0 %625
  %629 = vset.pattern.permute.xlu0 0
  %630 = vperm.xlu0 %629, %v612
  %v631 = vpop.permute.xlu0 %630
  %v634 = vsel %vm78, %v604, 0
  %v637 = vsel %vm78, %v605, 0
  %v640 = vsel %vm78, %v606, 0
  %v643 = vsel %vm78, %v607, 0
  %645 = vmatprep.subr.mxu0 0.0
  %646 = vmatpush1.msra.mxu0 %v599
  %647 = vmatprep.subr.mxu0 0.0
  %648 = vmatpush1.msra.mxu0 %v600
  %649 = vmatprep.subr.mxu0 0.0
  %650 = vmatpush1.msra.mxu0 %v601
  %651 = vmatprep.subr.mxu0 0.0
  %652 = vmatpush1.msra.mxu0 %v602
  %653 = vmatprep.subr.mxu0 0.0
  %654 = vmatpush1.msra.mxu0 0.0
  %655 = vmatprep.subr.mxu0 0.0
  %656 = vmatpush1.msra.mxu0 0.0
  %657 = vmatprep.subr.mxu0 0.0
  %658 = vmatpush1.msra.mxu0 0.0
  %659 = vmatprep.subr.mxu0 0.0
  %660 = vmatpush1.msra.mxu0 0.0
  %661 = vmatprep.subr.mxu0 0.0
  %662 = vmatpush1.msra.mxu0 0.0
  %663 = vmatprep.subr.mxu0 0.0
  %664 = vmatpush1.msra.mxu0 0.0
  %665 = vmatprep.subr.mxu0 0.0
  %666 = vmatpush1.msra.mxu0 0.0
  %667 = vmatprep.subr.mxu0 0.0
  %668 = vmatpush1.msra.mxu0 0.0
  %669 = vmatprep.subr.mxu0 0.0
  %670 = vmatpush1.msra.mxu0 0.0
  %671 = vmatprep.subr.mxu0 0.0
  %672 = vmatpush1.msra.mxu0 0.0
  %673 = vmatprep.subr.mxu0 0.0
  %674 = vmatpush1.msra.mxu0 0.0
  %675 = vmatprep.subr.mxu0 0.0
  %676 = vmatpush1.msra.mxu0 0.0
  %677 = vmatprep.subr.mxu0 0.0
  %678 = vmatpush1.msra.mxu0 0.0
  %679 = vmatprep.subr.mxu0 0.0
  %680 = vmatpush1.msra.mxu0 0.0
  %681 = vmatprep.subr.mxu0 0.0
  %682 = vmatpush1.msra.mxu0 0.0
  %683 = vmatprep.subr.mxu0 0.0
  %684 = vmatpush1.msra.mxu0 0.0
  %685 = vmatprep.subr.mxu0 0.0
  %686 = vmatpush1.msra.mxu0 0.0
  %687 = vmatprep.subr.mxu0 0.0
  %688 = vmatpush1.msra.mxu0 0.0
  %689 = vmatprep.subr.mxu0 0.0
  %690 = vmatpush1.msra.mxu0 0.0
  %691 = vmatprep.subr.mxu0 0.0
  %692 = vmatpush1.msra.mxu0 0.0
  %693 = vmatprep.subr.mxu0 0.0
  %694 = vmatpush1.msra.mxu0 0.0
  %695 = vmatprep.subr.mxu0 0.0
  %696 = vmatpush1.msra.mxu0 0.0
  %697 = vmatprep.subr.mxu0 0.0
  %698 = vmatpush1.msra.mxu0 0.0
  %699 = vmatprep.subr.mxu0 0.0
  %700 = vmatpush1.msra.mxu0 0.0
  %701 = vmatprep.subr.mxu0 0.0
  %702 = vmatpush1.msra.mxu0 0.0
  %703 = vmatprep.subr.mxu0 0.0
  %704 = vmatpush1.msra.mxu0 0.0
  %705 = vmatprep.subr.mxu0 0.0
  %706 = vmatpush1.msra.mxu0 0.0
  %707 = vmatprep.subr.mxu0 0.0
  %708 = vmatpush1.msra.mxu0 0.0
  %709 = vmatprep.mubr.f32.mxu0 0.0
  %710 = vmatmul.mubr.f32.gmra.mrb[0].mxu0 %v634
  %v711 = vpop.f32.mrb[0].mxu0
  %v712 = vadd.f32 %v616, %v711
  %v713 = vpop.f32.mrb[0].mxu0
  %714 = vmatprep.mubr.f32.mxu0 0.0
  %715 = vmatmul.mubr.f32.gmra.mrb[0].mxu0 %v637
  %v716 = vpop.f32.mrb[0].mxu0
  %v717 = vadd.f32 %v621, %v716
  %v718 = vpop.f32.mrb[0].mxu0
  %719 = vmatprep.mubr.f32.mxu0 0.0
  %720 = vmatmul.mubr.f32.gmra.mrb[0].mxu0 %v640
  %v721 = vpop.f32.mrb[0].mxu0
  %v722 = vadd.f32 %v626, %v721
  %v723 = vpop.f32.mrb[0].mxu0
  %724 = vmatprep.mubr.f32.mxu0 0.0
  %725 = vmatmul.mubr.f32.gmra.mrb[0].mxu0 %v643
  %v726 = vpop.f32.mrb[0].mxu0
  %v727 = vadd.f32 %v631, %v726
  %v728 = vpop.f32.mrb[0].mxu0
  %729 = vdwg.mxu0
  %vm730 = vcmp.ge.f32.partialorder %v712, 0.0
  %vm731 = vcmp.ge.f32.partialorder %v717, 0.0
  %vm732 = vcmp.ge.f32.partialorder %v722, 0.0
  %vm733 = vcmp.ge.f32.partialorder %v727, 0.0
  %v734 = vmul.f32 %v712, 0.01
  %v735 = vmul.f32 %v717, 0.01
  %v736 = vmul.f32 %v722, 0.01
  %v737 = vmul.f32 %v727, 0.01
  %v738 = vsel %vm730, %v712, %v734
  %v739 = vsel %vm731, %v717, %v735
  %v740 = vsel %vm732, %v722, %v736
  %v741 = vsel %vm733, %v727, %v737
  %s742 = scalar_lea.vmem %s3, 128
  %v743 = vld [vmem:[%s742] sm:$0xff]
  %v744 = vld [vmem:[%s742 + $0x8] sm:$0xff]
  %v745 = vld [vmem:[%s742 + $0x10] sm:$0xff]
  %v746 = vld [vmem:[%s742 + $0x18] sm:$0xff]
  %s747 = scalar_lea.vmem %s4, 128
  %v748 = vld [vmem:[%s747] sm:$0xff]
  %v749 = vld [vmem:[%s747 + $0x8] sm:$0xff]
  %v750 = vld [vmem:[%s747 + $0x10] sm:$0xff]
  %v751 = vld [vmem:[%s747 + $0x18] sm:$0xff]
  %753 = vset.pattern.permute.xlu0 0
  %754 = vperm.xlu0 %753, %v748
  %v755 = vpop.permute.xlu0 %754
  %758 = vset.pattern.permute.xlu0 0
  %759 = vperm.xlu0 %758, %v749
  %v760 = vpop.permute.xlu0 %759
  %763 = vset.pattern.permute.xlu0 0
  %764 = vperm.xlu0 %763, %v750
  %v765 = vpop.permute.xlu0 %764
  %768 = vset.pattern.permute.xlu0 0
  %769 = vperm.xlu0 %768, %v751
  %v770 = vpop.permute.xlu0 %769
  %v773 = vsel %vm78, %v743, 0
  %v776 = vsel %vm78, %v744, 0
  %v779 = vsel %vm78, %v745, 0
  %v782 = vsel %vm78, %v746, 0
  %784 = vmatprep.subr.mxu0 0.0
  %785 = vmatpush1.msra.mxu0 %v738
  %786 = vmatprep.subr.mxu0 0.0
  %787 = vmatpush1.msra.mxu0 %v739
  %788 = vmatprep.subr.mxu0 0.0
  %789 = vmatpush1.msra.mxu0 %v740
  %790 = vmatprep.subr.mxu0 0.0
  %791 = vmatpush1.msra.mxu0 %v741
  %792 = vmatprep.subr.mxu0 0.0
  %793 = vmatpush1.msra.mxu0 0.0
  %794 = vmatprep.subr.mxu0 0.0
  %795 = vmatpush1.msra.mxu0 0.0
  %796 = vmatprep.subr.mxu0 0.0
  %797 = vmatpush1.msra.mxu0 0.0
  %798 = vmatprep.subr.mxu0 0.0
  %799 = vmatpush1.msra.mxu0 0.0
  %800 = vmatprep.subr.mxu0 0.0
  %801 = vmatpush1.msra.mxu0 0.0
  %802 = vmatprep.subr.mxu0 0.0
  %803 = vmatpush1.msra.mxu0 0.0
  %804 = vmatprep.subr.mxu0 0.0
  %805 = vmatpush1.msra.mxu0 0.0
  %806 = vmatprep.subr.mxu0 0.0
  %807 = vmatpush1.msra.mxu0 0.0
  %808 = vmatprep.subr.mxu0 0.0
  %809 = vmatpush1.msra.mxu0 0.0
  %810 = vmatprep.subr.mxu0 0.0
  %811 = vmatpush1.msra.mxu0 0.0
  %812 = vmatprep.subr.mxu0 0.0
  %813 = vmatpush1.msra.mxu0 0.0
  %814 = vmatprep.subr.mxu0 0.0
  %815 = vmatpush1.msra.mxu0 0.0
  %816 = vmatprep.subr.mxu0 0.0
  %817 = vmatpush1.msra.mxu0 0.0
  %818 = vmatprep.subr.mxu0 0.0
  %819 = vmatpush1.msra.mxu0 0.0
  %820 = vmatprep.subr.mxu0 0.0
  %821 = vmatpush1.msra.mxu0 0.0
  %822 = vmatprep.subr.mxu0 0.0
  %823 = vmatpush1.msra.mxu0 0.0
  %824 = vmatprep.subr.mxu0 0.0
  %825 = vmatpush1.msra.mxu0 0.0
  %826 = vmatprep.subr.mxu0 0.0
  %827 = vmatpush1.msra.mxu0 0.0
  %828 = vmatprep.subr.mxu0 0.0
  %829 = vmatpush1.msra.mxu0 0.0
  %830 = vmatprep.subr.mxu0 0.0
  %831 = vmatpush1.msra.mxu0 0.0
  %832 = vmatprep.subr.mxu0 0.0
  %833 = vmatpush1.msra.mxu0 0.0
  %834 = vmatprep.subr.mxu0 0.0
  %835 = vmatpush1.msra.mxu0 0.0
  %836 = vmatprep.subr.mxu0 0.0
  %837 = vmatpush1.msra.mxu0 0.0
  %838 = vmatprep.subr.mxu0 0.0
  %839 = vmatpush1.msra.mxu0 0.0
  %840 = vmatprep.subr.mxu0 0.0
  %841 = vmatpush1.msra.mxu0 0.0
  %842 = vmatprep.subr.mxu0 0.0
  %843 = vmatpush1.msra.mxu0 0.0
  %844 = vmatprep.subr.mxu0 0.0
  %845 = vmatpush1.msra.mxu0 0.0
  %846 = vmatprep.subr.mxu0 0.0
  %847 = vmatpush1.msra.mxu0 0.0
  %848 = vmatprep.mubr.f32.mxu0 0.0
  %849 = vmatmul.mubr.f32.gmra.mrb[0].mxu0 %v773
  %v850 = vpop.f32.mrb[0].mxu0
  %v851 = vadd.f32 %v755, %v850
  %v852 = vpop.f32.mrb[0].mxu0
  %853 = vmatprep.mubr.f32.mxu0 0.0
  %854 = vmatmul.mubr.f32.gmra.mrb[0].mxu0 %v776
  %v855 = vpop.f32.mrb[0].mxu0
  %v856 = vadd.f32 %v760, %v855
  %v857 = vpop.f32.mrb[0].mxu0
  %858 = vmatprep.mubr.f32.mxu0 0.0
  %859 = vmatmul.mubr.f32.gmra.mrb[0].mxu0 %v779
  %v860 = vpop.f32.mrb[0].mxu0
  %v861 = vadd.f32 %v765, %v860
  %v862 = vpop.f32.mrb[0].mxu0
  %863 = vmatprep.mubr.f32.mxu0 0.0
  %864 = vmatmul.mubr.f32.gmra.mrb[0].mxu0 %v782
  %v865 = vpop.f32.mrb[0].mxu0
  %v866 = vadd.f32 %v770, %v865
  %v867 = vpop.f32.mrb[0].mxu0
  %868 = vdwg.mxu0
  %vm869 = vcmp.ge.f32.partialorder %v851, 0.0
  %vm870 = vcmp.ge.f32.partialorder %v856, 0.0
  %vm871 = vcmp.ge.f32.partialorder %v861, 0.0
  %vm872 = vcmp.ge.f32.partialorder %v866, 0.0
  %v873 = vmul.f32 %v851, 0.01
  %v874 = vmul.f32 %v856, 0.01
  %v875 = vmul.f32 %v861, 0.01
  %v876 = vmul.f32 %v866, 0.01
  %v877 = vsel %vm869, %v851, %v873
  %v878 = vsel %vm870, %v856, %v874
  %v879 = vsel %vm871, %v861, %v875
  %v880 = vsel %vm872, %v866, %v876
  %s881 = scalar_lea.vmem %s3, 160
  %v882 = vld [vmem:[%s881] sm:$0xff]
  %v883 = vld [vmem:[%s881 + $0x8] sm:$0xff]
  %v884 = vld [vmem:[%s881 + $0x10] sm:$0xff]
  %v885 = vld [vmem:[%s881 + $0x18] sm:$0xff]
  %s886 = scalar_lea.vmem %s4, 160
  %v887 = vld [vmem:[%s886] sm:$0xff]
  %v888 = vld [vmem:[%s886 + $0x8] sm:$0xff]
  %v889 = vld [vmem:[%s886 + $0x10] sm:$0xff]
  %v890 = vld [vmem:[%s886 + $0x18] sm:$0xff]
  %892 = vset.pattern.permute.xlu0 0
  %893 = vperm.xlu0 %892, %v887
  %v894 = vpop.permute.xlu0 %893
  %897 = vset.pattern.permute.xlu0 0
  %898 = vperm.xlu0 %897, %v888
  %v899 = vpop.permute.xlu0 %898
  %902 = vset.pattern.permute.xlu0 0
  %903 = vperm.xlu0 %902, %v889
  %v904 = vpop.permute.xlu0 %903
  %907 = vset.pattern.permute.xlu0 0
  %908 = vperm.xlu0 %907, %v890
  %v909 = vpop.permute.xlu0 %908
  %v912 = vsel %vm78, %v882, 0
  %v915 = vsel %vm78, %v883, 0
  %v918 = vsel %vm78, %v884, 0
  %v921 = vsel %vm78, %v885, 0
  %923 = vmatprep.subr.mxu0 0.0
  %924 = vmatpush1.msra.mxu0 %v877
  %925 = vmatprep.subr.mxu0 0.0
  %926 = vmatpush1.msra.mxu0 %v878
  %927 = vmatprep.subr.mxu0 0.0
  %928 = vmatpush1.msra.mxu0 %v879
  %929 = vmatprep.subr.mxu0 0.0
  %930 = vmatpush1.msra.mxu0 %v880
  %931 = vmatprep.subr.mxu0 0.0
  %932 = vmatpush1.msra.mxu0 0.0
  %933 = vmatprep.subr.mxu0 0.0
  %934 = vmatpush1.msra.mxu0 0.0
  %935 = vmatprep.subr.mxu0 0.0
  %936 = vmatpush1.msra.mxu0 0.0
  %937 = vmatprep.subr.mxu0 0.0
  %938 = vmatpush1.msra.mxu0 0.0
  %939 = vmatprep.subr.mxu0 0.0
  %940 = vmatpush1.msra.mxu0 0.0
  %941 = vmatprep.subr.mxu0 0.0
  %942 = vmatpush1.msra.mxu0 0.0
  %943 = vmatprep.subr.mxu0 0.0
  %944 = vmatpush1.msra.mxu0 0.0
  %945 = vmatprep.subr.mxu0 0.0
  %946 = vmatpush1.msra.mxu0 0.0
  %947 = vmatprep.subr.mxu0 0.0
  %948 = vmatpush1.msra.mxu0 0.0
  %949 = vmatprep.subr.mxu0 0.0
  %950 = vmatpush1.msra.mxu0 0.0
  %951 = vmatprep.subr.mxu0 0.0
  %952 = vmatpush1.msra.mxu0 0.0
  %953 = vmatprep.subr.mxu0 0.0
  %954 = vmatpush1.msra.mxu0 0.0
  %955 = vmatprep.subr.mxu0 0.0
  %956 = vmatpush1.msra.mxu0 0.0
  %957 = vmatprep.subr.mxu0 0.0
  %958 = vmatpush1.msra.mxu0 0.0
  %959 = vmatprep.subr.mxu0 0.0
  %960 = vmatpush1.msra.mxu0 0.0
  %961 = vmatprep.subr.mxu0 0.0
  %962 = vmatpush1.msra.mxu0 0.0
  %963 = vmatprep.subr.mxu0 0.0
  %964 = vmatpush1.msra.mxu0 0.0
  %965 = vmatprep.subr.mxu0 0.0
  %966 = vmatpush1.msra.mxu0 0.0
  %967 = vmatprep.subr.mxu0 0.0
  %968 = vmatpush1.msra.mxu0 0.0
  %969 = vmatprep.subr.mxu0 0.0
  %970 = vmatpush1.msra.mxu0 0.0
  %971 = vmatprep.subr.mxu0 0.0
  %972 = vmatpush1.msra.mxu0 0.0
  %973 = vmatprep.subr.mxu0 0.0
  %974 = vmatpush1.msra.mxu0 0.0
  %975 = vmatprep.subr.mxu0 0.0
  %976 = vmatpush1.msra.mxu0 0.0
  %977 = vmatprep.subr.mxu0 0.0
  %978 = vmatpush1.msra.mxu0 0.0
  %979 = vmatprep.subr.mxu0 0.0
  %980 = vmatpush1.msra.mxu0 0.0
  %981 = vmatprep.subr.mxu0 0.0
  %982 = vmatpush1.msra.mxu0 0.0
  %983 = vmatprep.subr.mxu0 0.0
  %984 = vmatpush1.msra.mxu0 0.0
  %985 = vmatprep.subr.mxu0 0.0
  %986 = vmatpush1.msra.mxu0 0.0
  %987 = vmatprep.mubr.f32.mxu0 0.0
  %988 = vmatmul.mubr.f32.gmra.mrb[0].mxu0 %v912
  %v989 = vpop.f32.mrb[0].mxu0
  %v990 = vadd.f32 %v894, %v989
  %v991 = vpop.f32.mrb[0].mxu0
  %992 = vmatprep.mubr.f32.mxu0 0.0
  %993 = vmatmul.mubr.f32.gmra.mrb[0].mxu0 %v915
  %v994 = vpop.f32.mrb[0].mxu0
  %v995 = vadd.f32 %v899, %v994
  %v996 = vpop.f32.mrb[0].mxu0
  %997 = vmatprep.mubr.f32.mxu0 0.0
  %998 = vmatmul.mubr.f32.gmra.mrb[0].mxu0 %v918
  %v999 = vpop.f32.mrb[0].mxu0
  %v1000 = vadd.f32 %v904, %v999
  %v1001 = vpop.f32.mrb[0].mxu0
  %1002 = vmatprep.mubr.f32.mxu0 0.0
  %1003 = vmatmul.mubr.f32.gmra.mrb[0].mxu0 %v921
  %v1004 = vpop.f32.mrb[0].mxu0
  %v1005 = vadd.f32 %v909, %v1004
  %v1006 = vpop.f32.mrb[0].mxu0
  %1007 = vdwg.mxu0
  %vm1008 = vcmp.ge.f32.partialorder %v990, 0.0
  %vm1009 = vcmp.ge.f32.partialorder %v995, 0.0
  %vm1010 = vcmp.ge.f32.partialorder %v1000, 0.0
  %vm1011 = vcmp.ge.f32.partialorder %v1005, 0.0
  %v1012 = vmul.f32 %v990, 0.01
  %v1013 = vmul.f32 %v995, 0.01
  %v1014 = vmul.f32 %v1000, 0.01
  %v1015 = vmul.f32 %v1005, 0.01
  %v1016 = vsel %vm1008, %v990, %v1012
  %v1017 = vsel %vm1009, %v995, %v1013
  %v1018 = vsel %vm1010, %v1000, %v1014
  %v1019 = vsel %vm1011, %v1005, %v1015
  %s1020 = scalar_lea.vmem %s3, 192
  %v1021 = vld [vmem:[%s1020] sm:$0xff]
  %v1022 = vld [vmem:[%s1020 + $0x8] sm:$0xff]
  %v1023 = vld [vmem:[%s1020 + $0x10] sm:$0xff]
  %v1024 = vld [vmem:[%s1020 + $0x18] sm:$0xff]
  %s1025 = scalar_lea.vmem %s4, 192
  %v1026 = vld [vmem:[%s1025] sm:$0xff]
  %v1027 = vld [vmem:[%s1025 + $0x8] sm:$0xff]
  %v1028 = vld [vmem:[%s1025 + $0x10] sm:$0xff]
  %v1029 = vld [vmem:[%s1025 + $0x18] sm:$0xff]
  %1031 = vset.pattern.permute.xlu0 0
  %1032 = vperm.xlu0 %1031, %v1026
  %v1033 = vpop.permute.xlu0 %1032
  %1036 = vset.pattern.permute.xlu0 0
  %1037 = vperm.xlu0 %1036, %v1027
  %v1038 = vpop.permute.xlu0 %1037
  %1041 = vset.pattern.permute.xlu0 0
  %1042 = vperm.xlu0 %1041, %v1028
  %v1043 = vpop.permute.xlu0 %1042
  %1046 = vset.pattern.permute.xlu0 0
  %1047 = vperm.xlu0 %1046, %v1029
  %v1048 = vpop.permute.xlu0 %1047
  %v1051 = vsel %vm78, %v1021, 0
  %v1054 = vsel %vm78, %v1022, 0
  %v1057 = vsel %vm78, %v1023, 0
  %v1060 = vsel %vm78, %v1024, 0
  %1062 = vmatprep.subr.mxu0 0.0
  %1063 = vmatpush1.msra.mxu0 %v1016
  %1064 = vmatprep.subr.mxu0 0.0
  %1065 = vmatpush1.msra.mxu0 %v1017
  %1066 = vmatprep.subr.mxu0 0.0
  %1067 = vmatpush1.msra.mxu0 %v1018
  %1068 = vmatprep.subr.mxu0 0.0
  %1069 = vmatpush1.msra.mxu0 %v1019
  %1070 = vmatprep.subr.mxu0 0.0
  %1071 = vmatpush1.msra.mxu0 0.0
  %1072 = vmatprep.subr.mxu0 0.0
  %1073 = vmatpush1.msra.mxu0 0.0
  %1074 = vmatprep.subr.mxu0 0.0
  %1075 = vmatpush1.msra.mxu0 0.0
  %1076 = vmatprep.subr.mxu0 0.0
  %1077 = vmatpush1.msra.mxu0 0.0
  %1078 = vmatprep.subr.mxu0 0.0
  %1079 = vmatpush1.msra.mxu0 0.0
  %1080 = vmatprep.subr.mxu0 0.0
  %1081 = vmatpush1.msra.mxu0 0.0
  %1082 = vmatprep.subr.mxu0 0.0
  %1083 = vmatpush1.msra.mxu0 0.0
  %1084 = vmatprep.subr.mxu0 0.0
  %1085 = vmatpush1.msra.mxu0 0.0
  %1086 = vmatprep.subr.mxu0 0.0
  %1087 = vmatpush1.msra.mxu0 0.0
  %1088 = vmatprep.subr.mxu0 0.0
  %1089 = vmatpush1.msra.mxu0 0.0
  %1090 = vmatprep.subr.mxu0 0.0
  %1091 = vmatpush1.msra.mxu0 0.0
  %1092 = vmatprep.subr.mxu0 0.0
  %1093 = vmatpush1.msra.mxu0 0.0
  %1094 = vmatprep.subr.mxu0 0.0
  %1095 = vmatpush1.msra.mxu0 0.0
  %1096 = vmatprep.subr.mxu0 0.0
  %1097 = vmatpush1.msra.mxu0 0.0
  %1098 = vmatprep.subr.mxu0 0.0
  %1099 = vmatpush1.msra.mxu0 0.0
  %1100 = vmatprep.subr.mxu0 0.0
  %1101 = vmatpush1.msra.mxu0 0.0
  %1102 = vmatprep.subr.mxu0 0.0
  %1103 = vmatpush1.msra.mxu0 0.0
  %1104 = vmatprep.subr.mxu0 0.0
  %1105 = vmatpush1.msra.mxu0 0.0
  %1106 = vmatprep.subr.mxu0 0.0
  %1107 = vmatpush1.msra.mxu0 0.0
  %1108 = vmatprep.subr.mxu0 0.0
  %1109 = vmatpush1.msra.mxu0 0.0
  %1110 = vmatprep.subr.mxu0 0.0
  %1111 = vmatpush1.msra.mxu0 0.0
  %1112 = vmatprep.subr.mxu0 0.0
  %1113 = vmatpush1.msra.mxu0 0.0
  %1114 = vmatprep.subr.mxu0 0.0
  %1115 = vmatpush1.msra.mxu0 0.0
  %1116 = vmatprep.subr.mxu0 0.0
  %1117 = vmatpush1.msra.mxu0 0.0
  %1118 = vmatprep.subr.mxu0 0.0
  %1119 = vmatpush1.msra.mxu0 0.0
  %1120 = vmatprep.subr.mxu0 0.0
  %1121 = vmatpush1.msra.mxu0 0.0
  %1122 = vmatprep.subr.mxu0 0.0
  %1123 = vmatpush1.msra.mxu0 0.0
  %1124 = vmatprep.subr.mxu0 0.0
  %1125 = vmatpush1.msra.mxu0 0.0
  %1126 = vmatprep.mubr.f32.mxu0 0.0
  %1127 = vmatmul.mubr.f32.gmra.mrb[0].mxu0 %v1051
  %v1128 = vpop.f32.mrb[0].mxu0
  %v1129 = vadd.f32 %v1033, %v1128
  %v1130 = vpop.f32.mrb[0].mxu0
  %1131 = vmatprep.mubr.f32.mxu0 0.0
  %1132 = vmatmul.mubr.f32.gmra.mrb[0].mxu0 %v1054
  %v1133 = vpop.f32.mrb[0].mxu0
  %v1134 = vadd.f32 %v1038, %v1133
  %v1135 = vpop.f32.mrb[0].mxu0
  %1136 = vmatprep.mubr.f32.mxu0 0.0
  %1137 = vmatmul.mubr.f32.gmra.mrb[0].mxu0 %v1057
  %v1138 = vpop.f32.mrb[0].mxu0
  %v1139 = vadd.f32 %v1043, %v1138
  %v1140 = vpop.f32.mrb[0].mxu0
  %1141 = vmatprep.mubr.f32.mxu0 0.0
  %1142 = vmatmul.mubr.f32.gmra.mrb[0].mxu0 %v1060
  %v1143 = vpop.f32.mrb[0].mxu0
  %v1144 = vadd.f32 %v1048, %v1143
  %v1145 = vpop.f32.mrb[0].mxu0
  %1146 = vdwg.mxu0
  %vm1147 = vcmp.ge.f32.partialorder %v1129, 0.0
  %vm1148 = vcmp.ge.f32.partialorder %v1134, 0.0
  %vm1149 = vcmp.ge.f32.partialorder %v1139, 0.0
  %vm1150 = vcmp.ge.f32.partialorder %v1144, 0.0
  %v1151 = vmul.f32 %v1129, 0.01
  %v1152 = vmul.f32 %v1134, 0.01
  %v1153 = vmul.f32 %v1139, 0.01
  %v1154 = vmul.f32 %v1144, 0.01
  %v1155 = vsel %vm1147, %v1129, %v1151
  %v1156 = vsel %vm1148, %v1134, %v1152
  %v1157 = vsel %vm1149, %v1139, %v1153
  %v1158 = vsel %vm1150, %v1144, %v1154
  %1159 = vst.msk [vmem:[%s5] sm:$0xff] %vm28, %v1155
  %1160 = vst.msk [vmem:[%s5 + $0x8] sm:$0xff] %vm28, %v1156
  %1161 = vst.msk [vmem:[%s5 + $0x10] sm:$0xff] %vm28, %v1157
  %1162 = vst.msk [vmem:[%s5 + $0x18] sm:$0xff] %vm28, %v1158
  // Predicated region
  $region22: #{tpu_custom_call.1} parent=0 // pred_check
    _
  $region23: #{tpu_custom_call.1} parent=0 // pred_check_branch
    %1164 = sbr.rel (0) target = $region25
  $region24: #{tpu_custom_call.1} parent=0 // pred_region
    _
  $region25: #{tpu_custom_call.1} parent=0 // pred_fallthru
    _
  // Predicated region
  $region26: #{tpu_custom_call.1} parent=0 // pred_check
    _
  $region27: #{tpu_custom_call.1} parent=0 // pred_check_branch
    %1166 = sbr.rel (0) target = $region29
  $region28: #{tpu_custom_call.1} parent=0 // pred_region
    _
  $region29: #{tpu_custom_call.1} parent=0 // pred_fallthru
    _

</llo_original>
